<compile_context>
chip_gen: v5e
topology: v5e:2x2
jax: 0.10.0
libtpu: 0.0.40
codegen_flags: <defaults>
</compile_context>

<pallas_src>
import functools
import math

import jax
import jax.numpy as jnp
from jax.experimental import pallas as pl
from jax.experimental.pallas import tpu as pltpu

A_LO = -5.0
B_HI = 5.0
DX = 100
DX_PAD = 128          # lane-dense integration axis
BANDWIDTH = 0.01
INV_SQRT_2PI = 1.0 / math.sqrt(2.0 * math.pi)


def _round_up(x, m):
    return ((x + m - 1) // m) * m


def _continuous_sparsemax_kernel(lhs_ref, k_aug_ref, aug_ref, out_ref, *, m_col):
    # dot1: full exp argument in one MXU call.
    #   lhs  = [alpha | t0 | t1 | b | 0-pad]            (TB, F_PAD)  f32
    #   K_aug= [K ; T ; T^2 ; 1 ; 0-pad]                (F_PAD, 128) f32
    # Precision pinned: the argument is a cancellation of O(25)-sized terms.
    exp_arg = jnp.dot(lhs_ref[...], k_aug_ref[...],
                      precision=jax.lax.Precision.HIGHEST,
                      preferred_element_type=jnp.float32)          # (TB, 128)

    # ReLU + clamp(min=1e-8) collapse into a single max (clamp subsumes ReLU).
    exp_terms = jnp.maximum(exp_arg, 1e-8)

    # dot2: fused trapezoid reduction.  aug columns 0..M-1 give the M
    # unnormalized integrals, column m_col (=M) gives Z.  bf16 operands,
    # f32 accumulation -> single-pass MXU on v6e/v7x.
    raw = jnp.dot(exp_terms.astype(jnp.bfloat16), aug_ref[...],
                  preferred_element_type=jnp.float32)              # (TB, N_OUT)

    # Deferred normalization: EUP reciprocal on a (TB,1) column, broadcast mul.
    inv_z = pl.reciprocal(raw[:, m_col:m_col + 1], approx=True)
    out_ref[...] = (raw * inv_z).astype(out_ref.dtype)


def continuous_sparsemax(theta, mu_basis, sigma_basis, *, block_b=2048,
                         out_dtype=jnp.float32):
    """JAX/Pallas equivalent of ContinuousSparsemax.forward.

    theta: (B, N), N >= 3, theta[:, 1] < 0 (documented precondition).
    mu_basis, sigma_basis: (M,) basis parameters (psi[0].mu / psi[0].sigma).
    Returns (B, M) in `out_dtype` (float32 by default, matching the module).
    """
    theta = theta.astype(jnp.float32)
    B, N = theta.shape
    Nm2 = N - 2
    M = mu_basis.shape[0]

    F_PAD = _round_up(Nm2 + 3, 8)              # packed-LHS feature width
    N_OUT = _round_up(M + 1, 128)              # lane-dense output width

    # ---------------- batch tiling ----------------
    TB = min(block_b, _round_up(B, 8))         # multiple of 8
    B_pad = _round_up(B, TB)
    # v7x megacore: make sure the parallel grid has >= 2 tiles when possible.
    if B_pad // TB < 2 and B_pad > 8:
        TB = _round_up(B_pad // 2, 8)
        B_pad = _round_up(B, TB)
    grid = (B_pad // TB,)

    # ---------------- constants (hoisted out of the kernel) ----------------
    T = jnp.linspace(A_LO, B_HI, DX, dtype=jnp.float32)            # (DX,)
    dT = jnp.diff(T)
    w = jnp.zeros((DX,), jnp.float32)                              # trapezoid wts
    w = w.at[:-1].add(0.5 * dT)
    w = w.at[1:].add(0.5 * dT)

    inducing = jnp.linspace(0.0, 1.0, Nm2, dtype=jnp.float32)      # (N-2,)
    diff_in = inducing[:, None] - T[None, :]                       # cdist (1-D)
    Kmat = jnp.exp(-0.5 * diff_in * diff_in / BANDWIDTH)           # gaussian_rbf

    # Augmented RHS for dot1: [K ; T ; T^2 ; 1], zero-padded rows/lanes.
    K_aug = jnp.zeros((F_PAD, DX_PAD), jnp.float32)
    K_aug = K_aug.at[:Nm2, :DX].set(Kmat)
    K_aug = K_aug.at[Nm2, :DX].set(T)
    K_aug = K_aug.at[Nm2 + 1, :DX].set(T * T)
    K_aug = K_aug.at[Nm2 + 2, :DX].set(1.0)

    mu_b = mu_basis.astype(jnp.float32)[:, None]                   # (M, 1)
    sig_b = sigma_basis.astype(jnp.float32)[:, None]               # (M, 1)
    u = (mu_b - T[None, :]) / sig_b
    phi1 = INV_SQRT_2PI * jnp.exp(-0.5 * u * u) / sig_b            # (M, DX)

    # Augmented RHS for dot2: cols 0..M-1 -> w*phi1^T (integrals),
    # col M -> w (Z), everything else zero.  Shipped as bf16.
    aug = jnp.zeros((DX_PAD, N_OUT), jnp.float32)
    aug = aug.at[:DX, :M].set((w[None, :] * phi1).T)
    aug = aug.at[:DX, M].set(w)
    aug = aug.astype(jnp.bfloat16)

    # ---------------- packed LHS: [alpha | t0 | t1 | b] ----------------
    t0 = theta[:, 0:1]
    t1 = theta[:, 1:2]
    alpha = theta[:, 2:]
    bias = 1.0 + 0.25 * t0 * t0 / t1           # exact: 1 + t0^2/(4*t1)
    lhs = jnp.concatenate([alpha, t0, t1, bias], axis=1)           # (B, Nm2+3)
    lhs = jnp.pad(lhs, ((0, B_pad - B), (0, F_PAD - (Nm2 + 3))))   # zeros: benign

    kernel = functools.partial(_continuous_sparsemax_kernel, m_col=M)

    out_pad = pl.pallas_call(
        kernel,
        out_shape=jax.ShapeDtypeStruct((B_pad, N_OUT), out_dtype),
        grid_spec=pltpu.PrefetchScalarGridSpec(
            num_scalar_prefetch=0,
            grid=grid,
            in_specs=[
                pl.BlockSpec((TB, F_PAD), lambda i: (i, 0)),        # packed theta
                pl.BlockSpec((F_PAD, DX_PAD), lambda i: (0, 0)),    # K_aug (resident)
                pl.BlockSpec((DX_PAD, N_OUT), lambda i: (0, 0)),    # aug   (resident)
            ],
            out_specs=pl.BlockSpec((TB, N_OUT), lambda i: (i, 0)),
        ),
        compiler_params=pltpu.CompilerParams(
            dimension_semantics=("parallel",)),   # megacore-shard batch on v7x
    )(lhs, K_aug, aug)

    # Contiguous prefix slice (integrals were placed in columns 0..M-1).
    return out_pad[:B, :M]


# ---------------- pure-JAX reference (for tolerance check) ----------------
def _reference(theta, mu_basis, sigma_basis):
    theta = theta.astype(jnp.float32)
    T = jnp.linspace(A_LO, B_HI, DX, dtype=jnp.float32)
    Nm2 = theta.shape[1] - 2
    inducing = jnp.linspace(0.0, 1.0, Nm2, dtype=jnp.float32)
    K_in = inducing[:, None] - T[None, :]
    K = jnp.exp(-0.5 * K_in * K_in / BANDWIDTH)
    alpha = theta[:, 2:]
    f = jnp.matmul(alpha, K, precision=jax.lax.Precision.HIGHEST)  # (B, DX)
    sigma_sq = -0.5 / theta[:, 1:2]                      # (B, 1)
    mu = theta[:, 0:1] * sigma_sq                        # (B, 1)
    phi1 = (INV_SQRT_2PI
            * jnp.exp(-0.5 * ((mu_basis[:, None] - T[None, :])
                              / sigma_basis[:, None]) ** 2)
            / sigma_basis[:, None])                      # (M, DX)
    exp_terms = jnp.maximum(
        jnp.maximum(1.0 + f - 0.5 * (mu - T[None, :]) ** 2 / sigma_sq, 0.0),
        1e-8)                                            # (B, DX)

    def trapz(y):
        d = jnp.diff(T)
        return jnp.sum(0.5 * d * (y[..., 1:] + y[..., :-1]), axis=-1)

    Z = trapz(exp_terms)[:, None]                        # (B, 1)
    integrand = phi1[None, :, :] * exp_terms[:, None, :] / Z[:, :, None]
    return trapz(integrand)                              # (B, M)


if __name__ == "__main__":
    key = jax.random.PRNGKey(0)
    k1, _ = jax.random.split(key)

    B, N, M = 2, 10, 8   # batch, theta features (N-2 = 8 alphas), nb_basis
    theta = jax.random.normal(k1, (B, N), dtype=jnp.float32)
    # theta[:, 1] must be negative so sigma_sq = -0.5 / theta[:, 1] > 0
    theta = theta.at[:, 1].set(-(jnp.abs(theta[:, 1]) + 0.5))

    mu_basis = jnp.linspace(-1.0, 1.0, M, dtype=jnp.float32)
    sigma_basis = 0.5 * jnp.ones((M,), dtype=jnp.float32)

    out = continuous_sparsemax(theta, mu_basis, sigma_basis)
    out = jax.block_until_ready(out)
    assert out.shape == (B, M) and out.dtype == jnp.float32

    ref = _reference(theta, mu_basis, sigma_basis)
    assert bool(jnp.allclose(out, ref, rtol=2e-2, atol=1e-3)), \
        "Pallas kernel does not match pure-JAX reference"

    print("KERNEL_OK")
</pallas_src>

<mosaic_0001>
module attributes {stable_mosaic.version = 11 : i64} {
  func.func @_continuous_sparsemax_kernel(%arg0: i32, %arg1: memref<8x16xf32, #tpu.memory_space<vmem>>, %arg2: memref<16x128xf32, #tpu.memory_space<vmem>>, %arg3: memref<128x128xbf16, #tpu.memory_space<vmem>>, %arg4: memref<8x128xf32, #tpu.memory_space<vmem>>) attributes {dimension_semantics = [#tpu.dimension_semantics<parallel>], iteration_bounds = array<i64: 1>, scalar_prefetch = 0 : i64, scratch_operands = 0 : i64, tpu.core_type = #tpu.core_type<tc>, window_params = [{transform_indices = @transform_0, window_bounds = array<i64: 8, 16>}, {pipeline_mode = #tpu.pipeline_mode<synchronous>, transform_indices = @transform_1, window_bounds = array<i64: 16, 128>}, {pipeline_mode = #tpu.pipeline_mode<synchronous>, transform_indices = @transform_2, window_bounds = array<i64: 128, 128>}, {transform_indices = @transform_3, window_bounds = array<i64: 8, 128>}]} {
    %c0 = arith.constant 0 : index
    %c0_0 = arith.constant 0 : index
    %0 = vector.load %arg1[%c0, %c0_0] : memref<8x16xf32, #tpu.memory_space<vmem>>, vector<8x16xf32>
    %c0_1 = arith.constant 0 : index
    %c0_2 = arith.constant 0 : index
    %1 = vector.load %arg2[%c0_1, %c0_2] : memref<16x128xf32, #tpu.memory_space<vmem>>, vector<16x128xf32>
    %cst = arith.constant dense<0.000000e+00> : vector<8x128xf32>
    %2 = tpu.matmul %0, %1, %cst {dimension_numbers = #tpu.dot_dimension_numbers<[1], [0], [0], [1], [0, 0, 1, 1], [], []>, precision = #tpu.contract_precision<fp32>} : vector<8x16xf32>, vector<16x128xf32>, vector<8x128xf32> -> vector<8x128xf32>
    %cst_3 = arith.constant 9.99999993E-9 : f32
    %3 = vector.broadcast %cst_3 : f32 to vector<8x128xf32>
    %4 = arith.maximumf %2, %3 : vector<8x128xf32>
    %5 = arith.truncf %4 : vector<8x128xf32> to vector<8x128xbf16>
    %c0_4 = arith.constant 0 : index
    %c0_5 = arith.constant 0 : index
    %6 = vector.load %arg3[%c0_4, %c0_5] : memref<128x128xbf16, #tpu.memory_space<vmem>>, vector<128x128xbf16>
    %cst_6 = arith.constant dense<0.000000e+00> : vector<8x128xf32>
    %7 = tpu.matmul %5, %6, %cst_6 {dimension_numbers = #tpu.dot_dimension_numbers<[1], [0], [0], [1], [0, 0, 1, 1], [], []>} : vector<8x128xbf16>, vector<128x128xbf16>, vector<8x128xf32> -> vector<8x128xf32>
    %8 = vector.extract_strided_slice %7 {offsets = [0, 8], sizes = [8, 1], strides = [1, 1]} : vector<8x128xf32> to vector<8x1xf32>
    %9 = tpu.reciprocal %8 {approx = true} : vector<8x1xf32> -> vector<8x1xf32>
    %10 = vector.broadcast %9 : vector<8x1xf32> to vector<8x128xf32>
    %11 = arith.mulf %7, %10 : vector<8x128xf32>
    %c0_7 = arith.constant 0 : index
    %c0_8 = arith.constant 0 : index
    %12 = vector.load %arg4[%c0_7, %c0_8] : memref<8x128xf32, #tpu.memory_space<vmem>>, vector<8x128xf32>
    tpu.vector_store %arg4[%c0_7, %c0_8], %11 {strides = array<i32>} : memref<8x128xf32, #tpu.memory_space<vmem>>, vector<8x128xf32>,
    return
  }
  func.func @transform_0(%arg0: i32) -> (i32, i32) {
    %c0_i32 = arith.constant 0 : i32
    %c0_i32_0 = arith.constant 0 : i32
    return %arg0, %c0_i32 : i32, i32
  }
  func.func @transform_1(%arg0: i32) -> (i32, i32) {
    %c0_i32 = arith.constant 0 : i32
    %c0_i32_0 = arith.constant 0 : i32
    %c0_i32_1 = arith.constant 0 : i32
    return %c0_i32, %c0_i32_0 : i32, i32
  }
  func.func @transform_2(%arg0: i32) -> (i32, i32) {
    %c0_i32 = arith.constant 0 : i32
    %c0_i32_0 = arith.constant 0 : i32
    %c0_i32_1 = arith.constant 0 : i32
    return %c0_i32, %c0_i32_0 : i32, i32
  }
  func.func @transform_3(%arg0: i32) -> (i32, i32) {
    %c0_i32 = arith.constant 0 : i32
    %c0_i32_0 = arith.constant 0 : i32
    return %arg0, %c0_i32 : i32, i32
  }
}

</mosaic_0001>

<llo_original>
// kernel: tpu_custom_call.1
$region0: #{tpu_custom_call.1}
  #allocation0 [shape = 'u32[]', space=smem, size = 0x4, offset = 0x4, fixed_abs, tag = 'smem constant byte address 0x4 - core index']
  #allocation1 [shape = 'u32[72,128]{1,0:T(1,128)}', space=vmem, size = 0x9000, scoped, tag = 'internal scratch']
  %s0 = inlined_call_operand.hbm [shape: f32[8,16], index: 0, kind: input, shape index: {}]
  %s1 = inlined_call_operand.hbm [shape: f32[16,128], index: 1, kind: input, shape index: {}]
  %s2 = inlined_call_operand.hbm [shape: bf16[128,128], index: 2, kind: input, shape index: {}]
  %s3 = inlined_call_operand.hbm [shape: f32[8,128], index: 3, kind: output, shape index: {}]
  %s4 = sld [smem:[#allocation0]]
  $region34: #{tpu_custom_call.1} parent=0
    _
  %s6 = ssub.s32 1, %s4
  %s7 = scalar_select 0, %s6, %s4
  $region1: #{tpu_custom_call.1} parent=0
    #allocation2 [shape = 'u8[4096]{0}', space=vmem, size = 0x1000, scoped, tag = 'input window, operand 0, single buffered']
    #allocation3 [shape = 's32[1]{0}', space=sflag, size = 0x4, scoped, tag = 'scoped memory for tpu_custom_call.1']
    #allocation4 [shape = 's32[1]{0}', space=sflag, size = 0x4, scoped, tag = 'scoped memory for tpu_custom_call.1']
    #allocation5 [shape = 'u8[8192]{0}', space=vmem, size = 0x2000, scoped, tag = 'input window, operand 1, single buffered']
    #allocation6 [shape = 's32[1]{0}', space=sflag, size = 0x4, scoped, tag = 'scoped memory for tpu_custom_call.1']
    #allocation7 [shape = 'u8[32768]{0}', space=vmem, size = 0x8000, scoped, tag = 'input window, operand 2, single buffered']
    #allocation8 [shape = 'u8[4096]{0}', space=vmem, size = 0x1000, scoped, tag = 'output window, operand 0, single buffered']
    %8 = vsyncpa [#allocation3], 0
    %9 = vsyncpa [#allocation6], 0
    %10 = vsyncpa [#allocation4], 0
    // Predicated region
    $region2: #{tpu_custom_call.1} parent=1 // pred_check
      _
    $region3: #{tpu_custom_call.1} parent=1 // pred_check_branch
      %12 = sbr.rel (0) target = $region5
    $region4: #{tpu_custom_call.1} parent=1 // pred_region
      %14 = vsyncadd [#allocation3], 0
      %s16 = sshll.u32 %s0, 4
      %s17 = int_to_ptr.hbm [resolvable:$true] %s16
      %s18 = sshll.u32 [#allocation2], 4
      %s19 = int_to_ptr.vmem [resolvable:$true] %s18
      %21 = dma.hbm_to_vmem [thread:$0]  %s17, 128, %s19, [#allocation3]
    $region5: #{tpu_custom_call.1} parent=1 // pred_fallthru
      _
    // Predicated region
    $region6: #{tpu_custom_call.1} parent=1 // pred_check
      _
    $region7: #{tpu_custom_call.1} parent=1 // pred_check_branch
      %23 = sbr.rel (0) target = $region9
    $region8: #{tpu_custom_call.1} parent=1 // pred_region
      %25 = vsyncadd [#allocation6], 0
      %s26 = sshll.u32 %s1, 4
      %s27 = int_to_ptr.hbm [resolvable:$true] %s26
      %s28 = sshll.u32 [#allocation5], 4
      %s29 = int_to_ptr.vmem [resolvable:$true] %s28
      %34 = dma.hbm_to_vmem [thread:$0]  %s27, 256, %s29, [#allocation6], 128, 128, 8
    $region9: #{tpu_custom_call.1} parent=1 // pred_fallthru
      _
    // Predicated region
    $region10: #{tpu_custom_call.1} parent=1 // pred_check
      _
    $region11: #{tpu_custom_call.1} parent=1 // pred_check_branch
      %36 = sbr.rel (0) target = $region13
    $region12: #{tpu_custom_call.1} parent=1 // pred_region
      %38 = vsyncadd [#allocation6], 0
      %s39 = sshll.u32 %s2, 4
      %s40 = int_to_ptr.hbm [resolvable:$true] %s39
      %s41 = sshll.u32 [#allocation7], 4
      %s42 = int_to_ptr.vmem [resolvable:$true] %s41
      %47 = dma.hbm_to_vmem [thread:$0]  %s40, 1024, %s42, [#allocation6], 64, 64, 4
    $region13: #{tpu_custom_call.1} parent=1 // pred_fallthru
      _
    // Predicated region
    $region14: #{tpu_custom_call.1} parent=1 // pred_check
      _
    $region15: #{tpu_custom_call.1} parent=1 // pred_check_branch
      %49 = sbr.rel (0) target = $region17
    $region16: #{tpu_custom_call.1} parent=1 // pred_region
      %51 = dma.done [#allocation3], 128
    $region17: #{tpu_custom_call.1} parent=1 // pred_fallthru
      _
    // Predicated region
    $region18: #{tpu_custom_call.1} parent=1 // pred_check
      _
    $region19: #{tpu_custom_call.1} parent=1 // pred_check_branch
      %53 = sbr.rel (0) target = $region21
    $region20: #{tpu_custom_call.1} parent=1 // pred_region
      %55 = dma.done [#allocation6], 256
    $region21: #{tpu_custom_call.1} parent=1 // pred_fallthru
      _
    // Predicated region
    $region22: #{tpu_custom_call.1} parent=1 // pred_check
      _
    $region23: #{tpu_custom_call.1} parent=1 // pred_check_branch
      %57 = sbr.rel (0) target = $region25
    $region24: #{tpu_custom_call.1} parent=1 // pred_region
      %59 = dma.done [#allocation6], 1024
    $region25: #{tpu_custom_call.1} parent=1 // pred_fallthru
      _
    %v60 = vld [vmem:[#allocation2] sm:$0xff]
    %v61 = vld [vmem:[#allocation5] sm:$0xff]
    %v62 = vld [vmem:[#allocation5 + $0x8] sm:$0xff]
    %vm63 = vcmask 130048
    %v65 = vsel %vm63, %v60, 0
    %67 = vmatpush.msra.mxu0 0.0
    %68 = vmatpush.msra.mxu0 0.0
    %69 = vmatpush.msra.mxu0 0.0
    %70 = vmatpush.msra.mxu0 0.0
    %71 = vmatpush.msra.mxu0 0.0
    %72 = vmatpush.msra.mxu0 0.0
    %73 = vmatpush.msra.mxu0 0.0
    %74 = vmatpush.msra.mxu0 0.0
    %75 = vmatpush.msra.mxu0 0.0
    %76 = vmatpush.msra.mxu0 0.0
    %77 = vmatpush.msra.mxu0 0.0
    %78 = vmatpush.msra.mxu0 0.0
    %79 = vmatpush.msra.mxu0 0.0
    %80 = vmatpush.msra.mxu0 0.0
    %v81 = vand.u32 %v62, 4294901760
    %82 = vmatpush.msra.mxu0 %v81
    %v83 = vand.u32 %v61, 4294901760
    %84 = vmatpush.msra.mxu0 %v83
    %v85 = vand.u32 %v65, 4294901760
    %v86 = vsub.f32 %v65, %v85
    %v87 = vand.u32 %v86, 4294901760
    %v88 = vsub.f32 %v86, %v87
    %v89 = vand.u32 %v88, 4294901760
    %90 = vmatmul.f32.gmra.mxu0 %v89
    %v91 = vpop.f32.mrf.mxu0
    %v92 = vadd.f32 0.0, %v91
    %93 = vdwg.mxu0
    %94 = vmatpush.msra.mxu0 0.0
    %95 = vmatpush.msra.mxu0 0.0
    %96 = vmatpush.msra.mxu0 0.0
    %97 = vmatpush.msra.mxu0 0.0
    %98 = vmatpush.msra.mxu0 0.0
    %99 = vmatpush.msra.mxu0 0.0
    %100 = vmatpush.msra.mxu0 0.0
    %101 = vmatpush.msra.mxu0 0.0
    %102 = vmatpush.msra.mxu0 0.0
    %103 = vmatpush.msra.mxu0 0.0
    %104 = vmatpush.msra.mxu0 0.0
    %105 = vmatpush.msra.mxu0 0.0
    %106 = vmatpush.msra.mxu0 0.0
    %107 = vmatpush.msra.mxu0 0.0
    %v108 = vand.u32 %v62, 4294901760
    %v109 = vsub.f32 %v62, %v108
    %v110 = vand.u32 %v109, 4294901760
    %v111 = vsub.f32 %v109, %v110
    %v112 = vand.u32 %v111, 4294901760
    %113 = vmatpush.msra.mxu0 %v112
    %v114 = vand.u32 %v61, 4294901760
    %v115 = vsub.f32 %v61, %v114
    %v116 = vand.u32 %v115, 4294901760
    %v117 = vsub.f32 %v115, %v116
    %v118 = vand.u32 %v117, 4294901760
    %119 = vmatpush.msra.mxu0 %v118
    %v120 = vand.u32 %v65, 4294901760
    %121 = vmatmul.f32.gmra.mxu0 %v120
    %v122 = vpop.f32.mrf.mxu0
    %v123 = vadd.f32 %v92, %v122
    %124 = vdwg.mxu0
    %125 = vmatpush.msra.mxu0 0.0
    %126 = vmatpush.msra.mxu0 0.0
    %127 = vmatpush.msra.mxu0 0.0
    %128 = vmatpush.msra.mxu0 0.0
    %129 = vmatpush.msra.mxu0 0.0
    %130 = vmatpush.msra.mxu0 0.0
    %131 = vmatpush.msra.mxu0 0.0
    %132 = vmatpush.msra.mxu0 0.0
    %133 = vmatpush.msra.mxu0 0.0
    %134 = vmatpush.msra.mxu0 0.0
    %135 = vmatpush.msra.mxu0 0.0
    %136 = vmatpush.msra.mxu0 0.0
    %137 = vmatpush.msra.mxu0 0.0
    %138 = vmatpush.msra.mxu0 0.0
    %v139 = vand.u32 %v62, 4294901760
    %v140 = vsub.f32 %v62, %v139
    %141 = vmatpush.msra.mxu0 %v140
    %v142 = vand.u32 %v61, 4294901760
    %v143 = vsub.f32 %v61, %v142
    %144 = vmatpush.msra.mxu0 %v143
    %v145 = vand.u32 %v65, 4294901760
    %v146 = vsub.f32 %v65, %v145
    %147 = vmatmul.f32.gmra.mxu0 %v146
    %v148 = vpop.f32.mrf.mxu0
    %v149 = vadd.f32 %v123, %v148
    %150 = vdwg.mxu0
    %151 = vmatpush.msra.mxu0 0.0
    %152 = vmatpush.msra.mxu0 0.0
    %153 = vmatpush.msra.mxu0 0.0
    %154 = vmatpush.msra.mxu0 0.0
    %155 = vmatpush.msra.mxu0 0.0
    %156 = vmatpush.msra.mxu0 0.0
    %157 = vmatpush.msra.mxu0 0.0
    %158 = vmatpush.msra.mxu0 0.0
    %159 = vmatpush.msra.mxu0 0.0
    %160 = vmatpush.msra.mxu0 0.0
    %161 = vmatpush.msra.mxu0 0.0
    %162 = vmatpush.msra.mxu0 0.0
    %163 = vmatpush.msra.mxu0 0.0
    %164 = vmatpush.msra.mxu0 0.0
    %v165 = vand.u32 %v62, 4294901760
    %166 = vmatpush.msra.mxu0 %v165
    %v167 = vand.u32 %v61, 4294901760
    %168 = vmatpush.msra.mxu0 %v167
    %v169 = vand.u32 %v65, 4294901760
    %v170 = vsub.f32 %v65, %v169
    %v171 = vand.u32 %v170, 4294901760
    %172 = vmatmul.f32.gmra.mxu0 %v171
    %v173 = vpop.f32.mrf.mxu0
    %v174 = vadd.f32 %v149, %v173
    %175 = vdwg.mxu0
    %176 = vmatpush.msra.mxu0 0.0
    %177 = vmatpush.msra.mxu0 0.0
    %178 = vmatpush.msra.mxu0 0.0
    %179 = vmatpush.msra.mxu0 0.0
    %180 = vmatpush.msra.mxu0 0.0
    %181 = vmatpush.msra.mxu0 0.0
    %182 = vmatpush.msra.mxu0 0.0
    %183 = vmatpush.msra.mxu0 0.0
    %184 = vmatpush.msra.mxu0 0.0
    %185 = vmatpush.msra.mxu0 0.0
    %186 = vmatpush.msra.mxu0 0.0
    %187 = vmatpush.msra.mxu0 0.0
    %188 = vmatpush.msra.mxu0 0.0
    %189 = vmatpush.msra.mxu0 0.0
    %v190 = vand.u32 %v62, 4294901760
    %v191 = vsub.f32 %v62, %v190
    %v192 = vand.u32 %v191, 4294901760
    %193 = vmatpush.msra.mxu0 %v192
    %v194 = vand.u32 %v61, 4294901760
    %v195 = vsub.f32 %v61, %v194
    %v196 = vand.u32 %v195, 4294901760
    %197 = vmatpush.msra.mxu0 %v196
    %v198 = vand.u32 %v65, 4294901760
    %199 = vmatmul.f32.gmra.mxu0 %v198
    %v200 = vpop.f32.mrf.mxu0
    %v201 = vadd.f32 %v174, %v200
    %202 = vdwg.mxu0
    %203 = vmatpush.msra.mxu0 0.0
    %204 = vmatpush.msra.mxu0 0.0
    %205 = vmatpush.msra.mxu0 0.0
    %206 = vmatpush.msra.mxu0 0.0
    %207 = vmatpush.msra.mxu0 0.0
    %208 = vmatpush.msra.mxu0 0.0
    %209 = vmatpush.msra.mxu0 0.0
    %210 = vmatpush.msra.mxu0 0.0
    %211 = vmatpush.msra.mxu0 0.0
    %212 = vmatpush.msra.mxu0 0.0
    %213 = vmatpush.msra.mxu0 0.0
    %214 = vmatpush.msra.mxu0 0.0
    %215 = vmatpush.msra.mxu0 0.0
    %216 = vmatpush.msra.mxu0 0.0
    %v217 = vand.u32 %v62, 4294901760
    %218 = vmatpush.msra.mxu0 %v217
    %v219 = vand.u32 %v61, 4294901760
    %220 = vmatpush.msra.mxu0 %v219
    %v221 = vand.u32 %v65, 4294901760
    %222 = vmatmul.f32.gmra.mxu0 %v221
    %v223 = vpop.f32.mrf.mxu0
    %v224 = vadd.f32 %v201, %v223
    %225 = vdwg.mxu0
    %v226 = vmax.f32 %v224, 1e-08
    %v227 = vpack.c.bf16 %v226, %v226
    %v228 = vld [vmem:[#allocation7] sm:$0xf]
    %v229 = vld [vmem:[#allocation7 + $0x4] sm:$0xf]
    %v230 = vld [vmem:[#allocation7 + $0x8] sm:$0xf]
    %v231 = vld [vmem:[#allocation7 + $0xc] sm:$0xf]
    %v232 = vld [vmem:[#allocation7 + $0x10] sm:$0xf]
    %v233 = vld [vmem:[#allocation7 + $0x14] sm:$0xf]
    %v234 = vld [vmem:[#allocation7 + $0x18] sm:$0xf]
    %v235 = vld [vmem:[#allocation7 + $0x1c] sm:$0xf]
    %v236 = vld [vmem:[#allocation7 + $0x20] sm:$0xf]
    %v237 = vld [vmem:[#allocation7 + $0x24] sm:$0xf]
    %v238 = vld [vmem:[#allocation7 + $0x28] sm:$0xf]
    %v239 = vld [vmem:[#allocation7 + $0x2c] sm:$0xf]
    %v240 = vld [vmem:[#allocation7 + $0x30] sm:$0xf]
    %v241 = vld [vmem:[#allocation7 + $0x34] sm:$0xf]
    %v242 = vld [vmem:[#allocation7 + $0x38] sm:$0xf]
    %v243 = vld [vmem:[#allocation7 + $0x3c] sm:$0xf]
    %v260 = vunpack.c.l.b16 %v228
    %v261 = vunpack.c.l.b16 %v229
    %v262 = vunpack.c.l.b16 %v230
    %v263 = vunpack.c.l.b16 %v231
    %v264 = vunpack.c.l.b16 %v232
    %v265 = vunpack.c.l.b16 %v233
    %v266 = vunpack.c.l.b16 %v234
    %v267 = vunpack.c.l.b16 %v235
    %v268 = vunpack.c.l.b16 %v236
    %v269 = vunpack.c.l.b16 %v237
    %v270 = vunpack.c.l.b16 %v238
    %v271 = vunpack.c.l.b16 %v239
    %v272 = vunpack.c.l.b16 %v240
    %v273 = vunpack.c.l.b16 %v241
    %v274 = vunpack.c.l.b16 %v242
    %v275 = vunpack.c.l.b16 %v243
    %v276 = vpack.c.b16 %v261, %v260
    %v277 = vpack.c.b16 %v263, %v262
    %v278 = vpack.c.b16 %v265, %v264
    %v279 = vpack.c.b16 %v267, %v266
    %v280 = vpack.c.b16 %v269, %v268
    %v281 = vpack.c.b16 %v271, %v270
    %v282 = vpack.c.b16 %v273, %v272
    %v283 = vpack.c.b16 %v275, %v274
    %292 = vmatpush.bf16.msra.mxu0 %v283
    %293 = vmatpush.bf16.msra.mxu0 %v282
    %294 = vmatpush.bf16.msra.mxu0 %v281
    %295 = vmatpush.bf16.msra.mxu0 %v280
    %296 = vmatpush.bf16.msra.mxu0 %v279
    %297 = vmatpush.bf16.msra.mxu0 %v278
    %298 = vmatpush.bf16.msra.mxu0 %v277
    %299 = vmatpush.bf16.msra.mxu0 %v276
    %300 = vmatmul.bf16.gmra.mxu0 %v227
    %v301 = vpop.f32.mrf.mxu0
    %v302 = vadd.f32 0.0, %v301
    %v303 = vpop.f32.mrf.mxu0
    %304 = vdwg.mxu0
    %v305 = vrcp.pop %v302
    %307 = vset.pattern.permute.xlu0 8
    %308 = vperm.xlu0 %307, %v305
    %v309 = vpop.permute.xlu0 %308
    %v311 = vmul.f32 %v302, %v309
    %312 = vst [vmem:[#allocation8] sm:$0xff] %v311
    // Predicated region
    $region26: #{tpu_custom_call.1} parent=1 // pred_check
      _
    $region27: #{tpu_custom_call.1} parent=1 // pred_check_branch
      %314 = sbr.rel (0) target = $region29
    $region28: #{tpu_custom_call.1} parent=1 // pred_region
      %316 = vsyncadd [#allocation4], 0
      %s318 = sshll.u32 [#allocation8], 4
      %s319 = int_to_ptr.vmem [resolvable:$true] %s318
      %s320 = sshll.u32 %s3, 4
      %s321 = int_to_ptr.hbm [resolvable:$true] %s320
      %323 = dma.vmem_to_hbm [thread:$0]  %s319, 128, %s321, [#allocation4]
    $region29: #{tpu_custom_call.1} parent=1 // pred_fallthru
      _
    // Predicated region
    $region30: #{tpu_custom_call.1} parent=1 // pred_check
      _
    $region31: #{tpu_custom_call.1} parent=1 // pred_check_branch
      %325 = sbr.rel (0) target = $region33
    $region32: #{tpu_custom_call.1} parent=1 // pred_region
      %327 = dma.done [#allocation4], 128
    $region33: #{tpu_custom_call.1} parent=1 // pred_fallthru
      _
    %328 = vsyncpa [#allocation3], 1
    %329 = vsyncpa [#allocation6], 1
    %330 = vsyncpa [#allocation4], 1

</llo_original>
